<compile_context>
chip_gen: v7x
topology: tpu7x:2x2x1
jax: 0.10.0
libtpu: 0.0.40
codegen_flags: <defaults>
</compile_context>

<pallas_src>
import jax
import jax.numpy as jnp
from jax.experimental import pallas as pl
from jax.experimental.pallas import tpu as pltpu


def _round_up(v, m):
    return (v + m - 1) // m * m


def _align_dim(d):
    """128-lane minimum; prefer 256 alignment (v6e/v7x MXU) when waste is small."""
    d_p = max(128, _round_up(d, 128))
    if d_p % 256 != 0 and d_p >= 1024:
        d_p = _round_up(d, 256)
    return d_p


def _vmem_capacity_bytes():
    try:
        return int(pltpu.get_tpu_info().vmem_capacity_bytes)
    except Exception:
        return 64 * 1024 * 1024  # conservative (v7x per-TC) fallback


def _vmem_cost_bytes(tile_n, tile_k, d_model_p):
    """Rough VMEM footprint: double-buffered tiles + live hidden activation."""
    x_buf = 2 * tile_n * d_model_p * 2         # bf16 x
    w1_buf = 2 * d_model_p * tile_k * 2        # bf16 W1
    w2_buf = 2 * tile_k * d_model_p * 2        # bf16 W2
    b_buf = 2 * 8 * (tile_k + d_model_p) * 4   # biases (sublane padded)
    out_buf = 2 * tile_n * d_model_p * 4       # f32 output / accumulator
    h_tmp = 6 * tile_n * tile_k                # f32 h + bf16 cast temp
    return x_buf + w1_buf + w2_buf + b_buf + out_buf + h_tmp


def _pick_tile_k(tile_n, d_model_p, d_ff_p, budget):
    """Largest 128-multiple divisor of d_ff_p that fits the VMEM budget
    (k_tiles == 1 -> fully resident weights when possible)."""
    cands = [c for c in range(d_ff_p, 127, -128) if d_ff_p % c == 0]
    for tk in cands:
        if _vmem_cost_bytes(tile_n, tk, d_model_p) <= budget:
            return tk
    return cands[-1] if cands else 128


def _select_tiles(n_blocks, d_model_p, d_ff_p, budget, max_blocks):
    """Token tile (divisor of padded token count, preferring >= 2 tiles for
    v7x dual-TC sharding) and a d_ff tile that fits the VMEM budget."""
    divs = [f for f in range(1, min(max_blocks, n_blocks) + 1)
            if n_blocks % f == 0]
    pref = [f for f in divs if n_blocks // f >= 2] or divs
    for f in sorted(pref, reverse=True):
        tile_n = 128 * f
        tile_k = _pick_tile_k(tile_n, d_model_p, d_ff_p, budget)
        if _vmem_cost_bytes(tile_n, tile_k, d_model_p) <= budget:
            return tile_n, tile_k
    return 128 * min(divs), 128  # last resort: smallest tiles


def ffn_kernel(x_ref, w1_ref, b1_ref, w2_ref, b2_ref, o_ref):
    # x_ref : (tile_n, d_model_p)  bf16 token tile
    # w1_ref: (d_model_p, tile_k)  bf16
    # b1_ref: (1, tile_k)          f32
    # w2_ref: (tile_k, d_model_p)  bf16
    # b2_ref: (1, d_model_p)       f32
    # o_ref : (tile_n, d_model_p)  f32   (resident across the k reduction axis)
    k = pl.program_id(1)

    h = jnp.dot(x_ref[...], w1_ref[...], preferred_element_type=jnp.float32)
    h = jnp.maximum(h + b1_ref[...], 0.0)        # ReLU (f32)
    # dropout: identity (eval mode)
    contrib = jnp.dot(h.astype(jnp.bfloat16), w2_ref[...],
                      preferred_element_type=jnp.float32)

    @pl.when(k == 0)
    def _():
        o_ref[...] = contrib + b2_ref[...]

    @pl.when(k != 0)
    def _():
        o_ref[...] += contrib


def make_positionwise_feed_forward(w1, b1, w2, b2):
    """Pads + casts the FFN weights ONCE and returns a jitted apply(x).

    x: (batch, seq, d_model); w1: (d_model, d_ff); w2: (d_ff, d_model).
    """
    d_model, d_ff = w1.shape
    assert w2.shape == (d_ff, d_model)
    d_model_p = _align_dim(d_model)
    d_ff_p = _align_dim(d_ff)

    # ---- one-time weight prep (bf16 weights halve DMA + VMEM footprint)
    w1_p = jnp.pad(w1.astype(jnp.bfloat16),
                   ((0, d_model_p - d_model), (0, d_ff_p - d_ff)))
    b1_p = jnp.pad(b1.astype(jnp.float32).reshape(1, d_ff),
                   ((0, 0), (0, d_ff_p - d_ff)))
    w2_p = jnp.pad(w2.astype(jnp.bfloat16),
                   ((0, d_ff_p - d_ff), (0, d_model_p - d_model)))
    b2_p = jnp.pad(b2.astype(jnp.float32).reshape(1, d_model),
                   ((0, 0), (0, d_model_p - d_model)))

    vmem_cap = _vmem_capacity_bytes()
    vmem_limit = int(vmem_cap * 0.85)   # ~54 MiB on v7x, ~109 MiB on v5e/v6e
    budget = int(vmem_cap * 0.65)
    max_blocks = 8 if vmem_cap >= (96 << 20) else 4   # tile_n up to 1024/512

    @jax.jit
    def apply(x):
        batch, seq, dm = x.shape
        assert dm == d_model
        n = batch * seq
        n_p = max(128, _round_up(n, 128))           # pad tokens to 128 only
        tile_n, tile_k = _select_tiles(n_p // 128, d_model_p, d_ff_p,
                                       budget, max_blocks)
        n_tiles = n_p // tile_n
        k_tiles = d_ff_p // tile_k

        # serpentine k order: reuse the seam weight block at i -> i+1
        if k_tiles > 1:
            def kmap(i, k):
                return k + (i % 2) * (k_tiles - 1 - 2 * k)
        else:
            def kmap(i, k):
                return 0

        # x padded + cast to bf16 in the wrapper (zero padding is exact)
        x2d = x.reshape(n, d_model)
        x_p = jnp.pad(x2d, ((0, n_p - n), (0, d_model_p - d_model))
                      ).astype(jnp.bfloat16)

        weight_passes = n_tiles if k_tiles > 1 else 1
        cost = pl.CostEstimate(
            flops=4 * n_p * d_model_p * d_ff_p,
            transcendentals=0,
            bytes_accessed=(n_p * d_model_p * 2                        # x (bf16)
                            + 2 * d_model_p * d_ff_p * 2 * weight_passes  # W1+W2
                            + (d_ff_p + d_model_p) * 4                 # biases
                            + n_p * d_model_p * 4))                    # out (f32)

        out_p = pl.pallas_call(
            ffn_kernel,
            out_shape=jax.ShapeDtypeStruct((n_p, d_model_p), jnp.float32),
            grid=(n_tiles, k_tiles),
            in_specs=[
                pl.BlockSpec((tile_n, d_model_p), lambda i, k: (i, 0)),      # x
                pl.BlockSpec((d_model_p, tile_k),
                             lambda i, k: (0, kmap(i, k))),                  # W1
                pl.BlockSpec((1, tile_k), lambda i, k: (0, kmap(i, k))),     # b1
                pl.BlockSpec((tile_k, d_model_p),
                             lambda i, k: (kmap(i, k), 0)),                  # W2
                pl.BlockSpec((1, d_model_p), lambda i, k: (0, 0)),           # b2
            ],
            out_specs=pl.BlockSpec((tile_n, d_model_p), lambda i, k: (i, 0)),
            compiler_params=pltpu.CompilerParams(
                dimension_semantics=("parallel", "arbitrary"),
                vmem_limit_bytes=vmem_limit),
            cost_estimate=cost,
        )(x_p, w1_p, b1_p, w2_p, b2_p)

        return out_p[:n, :d_model].astype(x.dtype).reshape(batch, seq, d_model)

    return apply


if __name__ == "__main__":
    batch, seq, d_model, d_ff = 2, 8, 32, 64
    key = jax.random.PRNGKey(0)
    kx, k1, k2, k3, k4 = jax.random.split(key, 5)
    # deterministic init mirroring nn.Linear's uniform(-1/sqrt(fan_in), ...)
    lim1 = 1.0 / (d_model ** 0.5)
    lim2 = 1.0 / (d_ff ** 0.5)
    x = jax.random.normal(kx, (batch, seq, d_model), jnp.float32)
    w1 = jax.random.uniform(k1, (d_model, d_ff), jnp.float32, -lim1, lim1)
    b1 = jax.random.uniform(k2, (d_ff,), jnp.float32, -lim1, lim1)
    w2 = jax.random.uniform(k3, (d_ff, d_model), jnp.float32, -lim2, lim2)
    b2 = jax.random.uniform(k4, (d_model,), jnp.float32, -lim2, lim2)

    ffn = make_positionwise_feed_forward(w1, b1, w2, b2)
    out = jax.block_until_ready(ffn(x))

    # reference with matching precision (bf16 operands, f32 accumulation)
    x2d = x.reshape(-1, d_model)
    h_ref = jnp.maximum(
        jnp.dot(x2d.astype(jnp.bfloat16), w1.astype(jnp.bfloat16),
                preferred_element_type=jnp.float32) + b1, 0.0)
    ref = (jnp.dot(h_ref.astype(jnp.bfloat16), w2.astype(jnp.bfloat16),
                   preferred_element_type=jnp.float32) + b2
           ).reshape(batch, seq, d_model)

    assert out.shape == (batch, seq, d_model)
    err = float(jnp.max(jnp.abs(out - ref)))
    assert jnp.allclose(out, ref, atol=1e-2, rtol=1e-2), err
    print("KERNEL_OK")
</pallas_src>

<mosaic_0001>
module attributes {stable_mosaic.version = 11 : i64} {
  func.func @ffn_kernel(%arg0: i32, %arg1: i32, %arg2: memref<128x128xbf16, #tpu.memory_space<vmem>>, %arg3: memref<128x128xbf16, #tpu.memory_space<vmem>>, %arg4: memref<1x128xf32, #tpu.memory_space<vmem>>, %arg5: memref<128x128xbf16, #tpu.memory_space<vmem>>, %arg6: memref<1x128xf32, #tpu.memory_space<vmem>>, %arg7: memref<128x128xf32, #tpu.memory_space<vmem>>) attributes {dimension_semantics = [#tpu.dimension_semantics<parallel>, #tpu.dimension_semantics<arbitrary>], iteration_bounds = array<i64: 1, 1>, scalar_prefetch = 0 : i64, scratch_operands = 0 : i64, tpu.core_type = #tpu.core_type<tc>, window_params = [{transform_indices = @transform_0, window_bounds = array<i64: 128, 128>}, {pipeline_mode = #tpu.pipeline_mode<synchronous>, transform_indices = @transform_1, window_bounds = array<i64: 128, 128>}, {pipeline_mode = #tpu.pipeline_mode<synchronous>, transform_indices = @transform_2, window_bounds = array<i64: 1, 128>}, {pipeline_mode = #tpu.pipeline_mode<synchronous>, transform_indices = @transform_3, window_bounds = array<i64: 128, 128>}, {pipeline_mode = #tpu.pipeline_mode<synchronous>, transform_indices = @transform_4, window_bounds = array<i64: 1, 128>}, {transform_indices = @transform_5, window_bounds = array<i64: 128, 128>}]} {
    %c0 = arith.constant 0 : index
    %c0_0 = arith.constant 0 : index
    %0 = vector.load %arg2[%c0, %c0_0] : memref<128x128xbf16, #tpu.memory_space<vmem>>, vector<128x128xbf16>
    %c0_1 = arith.constant 0 : index
    %c0_2 = arith.constant 0 : index
    %1 = vector.load %arg3[%c0_1, %c0_2] : memref<128x128xbf16, #tpu.memory_space<vmem>>, vector<128x128xbf16>
    %cst = arith.constant dense<0.000000e+00> : vector<128x128xf32>
    %2 = tpu.matmul %0, %1, %cst {dimension_numbers = #tpu.dot_dimension_numbers<[1], [0], [0], [1], [0, 0, 1, 1], [], []>} : vector<128x128xbf16>, vector<128x128xbf16>, vector<128x128xf32> -> vector<128x128xf32>
    %c0_3 = arith.constant 0 : index
    %c0_4 = arith.constant 0 : index
    %3 = vector.load %arg4[%c0_3, %c0_4] : memref<1x128xf32, #tpu.memory_space<vmem>>, vector<1x128xf32>
    %4 = vector.broadcast %3 : vector<1x128xf32> to vector<128x128xf32>
    %5 = arith.addf %2, %4 : vector<128x128xf32>
    %cst_5 = arith.constant 0.000000e+00 : f32
    %6 = vector.broadcast %cst_5 : f32 to vector<128x128xf32>
    %7 = arith.maximumf %5, %6 : vector<128x128xf32>
    %8 = arith.truncf %7 : vector<128x128xf32> to vector<128x128xbf16>
    %c0_6 = arith.constant 0 : index
    %c0_7 = arith.constant 0 : index
    %9 = vector.load %arg5[%c0_6, %c0_7] : memref<128x128xbf16, #tpu.memory_space<vmem>>, vector<128x128xbf16>
    %cst_8 = arith.constant dense<0.000000e+00> : vector<128x128xf32>
    %10 = tpu.matmul %8, %9, %cst_8 {dimension_numbers = #tpu.dot_dimension_numbers<[1], [0], [0], [1], [0, 0, 1, 1], [], []>} : vector<128x128xbf16>, vector<128x128xbf16>, vector<128x128xf32> -> vector<128x128xf32>
    %c0_i32 = arith.constant 0 : i32
    %11 = arith.cmpi eq, %arg1, %c0_i32 : i32
    %12 = arith.extui %11 : i1 to i32
    %c0_i32_9 = arith.constant 0 : i32
    %13 = arith.cmpi ne, %12, %c0_i32_9 : i32
    scf.if %13 {
      %c0_12 = arith.constant 0 : index
      %c0_13 = arith.constant 0 : index
      %17 = vector.load %arg6[%c0_12, %c0_13] : memref<1x128xf32, #tpu.memory_space<vmem>>, vector<1x128xf32>
      %18 = vector.broadcast %17 : vector<1x128xf32> to vector<128x128xf32>
      %19 = arith.addf %10, %18 : vector<128x128xf32>
      %c0_14 = arith.constant 0 : index
      %c0_15 = arith.constant 0 : index
      %20 = vector.load %arg7[%c0_14, %c0_15] : memref<128x128xf32, #tpu.memory_space<vmem>>, vector<128x128xf32>
      tpu.vector_store %arg7[%c0_14, %c0_15], %19 {strides = array<i32>} : memref<128x128xf32, #tpu.memory_space<vmem>>, vector<128x128xf32>,
    } else {
    }
    %c0_i32_10 = arith.constant 0 : i32
    %14 = arith.cmpi ne, %arg1, %c0_i32_10 : i32
    %15 = arith.extui %14 : i1 to i32
    %c0_i32_11 = arith.constant 0 : i32
    %16 = arith.cmpi ne, %15, %c0_i32_11 : i32
    scf.if %16 {
      %c0_12 = arith.constant 0 : index
      %c0_13 = arith.constant 0 : index
      %17 = vector.load %arg7[%c0_12, %c0_13] : memref<128x128xf32, #tpu.memory_space<vmem>>, vector<128x128xf32>
      %18 = arith.addf %17, %10 : vector<128x128xf32>
      %c0_14 = arith.constant 0 : index
      %c0_15 = arith.constant 0 : index
      %19 = vector.load %arg7[%c0_14, %c0_15] : memref<128x128xf32, #tpu.memory_space<vmem>>, vector<128x128xf32>
      tpu.vector_store %arg7[%c0_14, %c0_15], %18 {strides = array<i32>} : memref<128x128xf32, #tpu.memory_space<vmem>>, vector<128x128xf32>,
    } else {
    }
    return
  }
  func.func @transform_0(%arg0: i32, %arg1: i32) -> (i32, i32) {
    %c0_i32 = arith.constant 0 : i32
    %c0_i32_0 = arith.constant 0 : i32
    return %arg0, %c0_i32 : i32, i32
  }
  func.func @transform_1(%arg0: i32, %arg1: i32) -> (i32, i32) {
    %c0_i32 = arith.constant 0 : i32
    %c0_i32_0 = arith.constant 0 : i32
    %c0_i32_1 = arith.constant 0 : i32
    return %c0_i32, %c0_i32_0 : i32, i32
  }
  func.func @transform_2(%arg0: i32, %arg1: i32) -> (i32, i32) {
    %c0_i32 = arith.constant 0 : i32
    %c0_i32_0 = arith.constant 0 : i32
    %c0_i32_1 = arith.constant 0 : i32
    return %c0_i32, %c0_i32_0 : i32, i32
  }
  func.func @transform_3(%arg0: i32, %arg1: i32) -> (i32, i32) {
    %c0_i32 = arith.constant 0 : i32
    %c0_i32_0 = arith.constant 0 : i32
    %c0_i32_1 = arith.constant 0 : i32
    return %c0_i32, %c0_i32_0 : i32, i32
  }
  func.func @transform_4(%arg0: i32, %arg1: i32) -> (i32, i32) {
    %c0_i32 = arith.constant 0 : i32
    %c0_i32_0 = arith.constant 0 : i32
    %c0_i32_1 = arith.constant 0 : i32
    return %c0_i32, %c0_i32_0 : i32, i32
  }
  func.func @transform_5(%arg0: i32, %arg1: i32) -> (i32, i32) {
    %c0_i32 = arith.constant 0 : i32
    %c0_i32_0 = arith.constant 0 : i32
    return %arg0, %c0_i32 : i32, i32
  }
}

</mosaic_0001>

<llo_original>
// kernel: apply.1
$region0: #{apply.1}
  #allocation0 [shape = 'u32[]', space=smem, size = 0x4, offset = 0x4, fixed_abs, tag = 'smem constant byte address 0x4 - core index']
  #allocation1 [shape = 'u32[144,128]{1,0:T(1,128)}', space=vmem, size = 0x12000, scoped, tag = 'internal scratch']
  %s0 = inlined_call_operand.vmem [shape: bf16[128,128], index: 0, kind: input, shape index: {}]
  %s1 = inlined_call_operand.hbm [shape: bf16[128,128], index: 1, kind: input, shape index: {}]
  %s2 = inlined_call_operand.vmem [shape: f32[1,128], index: 2, kind: input, shape index: {}]
  %s3 = inlined_call_operand.vmem [shape: bf16[128,128], index: 3, kind: input, shape index: {}]
  %s4 = inlined_call_operand.vmem [shape: f32[1,128], index: 4, kind: input, shape index: {}]
  %s5 = inlined_call_operand.vmem [shape: f32[128,128], index: 5, kind: output, shape index: {}]
  %s6 = sld [smem:[#allocation0]]
  $region42: #{apply.1} parent=0
    _
  %s8 = ssub.s32 1, %s6
  %s9 = scalar_select 0, %s8, %s6
  $region1: #{apply.1} parent=0
    #allocation2 [shape = 'u8[32768]{0}', space=vmem, size = 0x8000, scoped, tag = 'input window, operand 1, single buffered']
    #allocation3 [shape = 's32[1]{0}', space=sflag, size = 0x4, scoped, tag = 'scoped memory for apply.1']
    %10 = vsyncpa [#allocation3], 0
    // Predicated region
    $region2: #{apply.1} parent=1 // pred_check
      _
    $region3: #{apply.1} parent=1 // pred_check_branch
      %12 = sbr.rel (0) target = $region5
    $region4: #{apply.1} parent=1 // pred_region
      _
    $region5: #{apply.1} parent=1 // pred_fallthru
      _
    // Predicated region
    $region6: #{apply.1} parent=1 // pred_check
      _
    $region7: #{apply.1} parent=1 // pred_check_branch
      %14 = sbr.rel (0) target = $region9
    $region8: #{apply.1} parent=1 // pred_region
      %s16 = ssub.s32 1024, 1024
      %17 = vsyncadd [#allocation3], %s16
      %s18 = sshll.u32 [#allocation2], 4
      %s19 = int_to_ptr.vmem [resolvable:$true] %s18
      %24 = dma.hbm_to_vmem [thread:$0]  %s1, 1024, %s19, [#allocation3], 64, 64, 4
    $region9: #{apply.1} parent=1 // pred_fallthru
      _
    // Predicated region
    $region10: #{apply.1} parent=1 // pred_check
      _
    $region11: #{apply.1} parent=1 // pred_check_branch
      %26 = sbr.rel (0) target = $region13
    $region12: #{apply.1} parent=1 // pred_region
      _
    $region13: #{apply.1} parent=1 // pred_fallthru
      _
    // Predicated region
    $region14: #{apply.1} parent=1 // pred_check
      _
    $region15: #{apply.1} parent=1 // pred_check_branch
      %28 = sbr.rel (0) target = $region17
    $region16: #{apply.1} parent=1 // pred_region
      _
    $region17: #{apply.1} parent=1 // pred_fallthru
      _
    // Predicated region
    $region18: #{apply.1} parent=1 // pred_check
      _
    $region19: #{apply.1} parent=1 // pred_check_branch
      %30 = sbr.rel (0) target = $region21
    $region20: #{apply.1} parent=1 // pred_region
      _
    $region21: #{apply.1} parent=1 // pred_fallthru
      _
    // Predicated region
    $region22: #{apply.1} parent=1 // pred_check
      _
    $region23: #{apply.1} parent=1 // pred_check_branch
      %32 = sbr.rel (0) target = $region25
    $region24: #{apply.1} parent=1 // pred_region
      %33 = dma.done [#allocation3], 1024
    $region25: #{apply.1} parent=1 // pred_fallthru
      _
    %v35 = vld [vmem:[%s0] sm:$0xf]
    %v36 = vld [vmem:[%s0 + $0x4] sm:$0xf]
    %v37 = vld [vmem:[%s0 + $0x8] sm:$0xf]
    %v38 = vld [vmem:[%s0 + $0xc] sm:$0xf]
    %v39 = vld [vmem:[%s0 + $0x10] sm:$0xf]
    %v40 = vld [vmem:[%s0 + $0x14] sm:$0xf]
    %v41 = vld [vmem:[%s0 + $0x18] sm:$0xf]
    %v42 = vld [vmem:[%s0 + $0x1c] sm:$0xf]
    %v43 = vld [vmem:[%s0 + $0x20] sm:$0xf]
    %v44 = vld [vmem:[%s0 + $0x24] sm:$0xf]
    %v45 = vld [vmem:[%s0 + $0x28] sm:$0xf]
    %v46 = vld [vmem:[%s0 + $0x2c] sm:$0xf]
    %v47 = vld [vmem:[%s0 + $0x30] sm:$0xf]
    %v48 = vld [vmem:[%s0 + $0x34] sm:$0xf]
    %v49 = vld [vmem:[%s0 + $0x38] sm:$0xf]
    %v50 = vld [vmem:[%s0 + $0x3c] sm:$0xf]
    %v51 = vld [vmem:[#allocation2] sm:$0xf]
    %v52 = vld [vmem:[#allocation2 + $0x4] sm:$0xf]
    %v53 = vld [vmem:[#allocation2 + $0x8] sm:$0xf]
    %v54 = vld [vmem:[#allocation2 + $0xc] sm:$0xf]
    %v55 = vld [vmem:[#allocation2 + $0x10] sm:$0xf]
    %v56 = vld [vmem:[#allocation2 + $0x14] sm:$0xf]
    %v57 = vld [vmem:[#allocation2 + $0x18] sm:$0xf]
    %v58 = vld [vmem:[#allocation2 + $0x1c] sm:$0xf]
    %v59 = vld [vmem:[#allocation2 + $0x20] sm:$0xf]
    %v60 = vld [vmem:[#allocation2 + $0x24] sm:$0xf]
    %v61 = vld [vmem:[#allocation2 + $0x28] sm:$0xf]
    %v62 = vld [vmem:[#allocation2 + $0x2c] sm:$0xf]
    %v63 = vld [vmem:[#allocation2 + $0x30] sm:$0xf]
    %v64 = vld [vmem:[#allocation2 + $0x34] sm:$0xf]
    %v65 = vld [vmem:[#allocation2 + $0x38] sm:$0xf]
    %v66 = vld [vmem:[#allocation2 + $0x3c] sm:$0xf]
    %v67 = vld [vmem:[%s2] sm:$0x1]
    %v69 = vlaneseq
    %v70 = vshrl.u32 %v69, 7
    %v71 = vsub.s32 0, %v70
    %v72 = vrot.slane %v67, %v71
    %v90 = vunpack.c.l.b16 %v35
    %v91 = vunpack.c.l.b16 %v36
    %v92 = vunpack.c.l.b16 %v37
    %v93 = vunpack.c.l.b16 %v38
    %v94 = vunpack.c.l.b16 %v39
    %v95 = vunpack.c.l.b16 %v40
    %v96 = vunpack.c.l.b16 %v41
    %v97 = vunpack.c.l.b16 %v42
    %v98 = vunpack.c.l.b16 %v43
    %v99 = vunpack.c.l.b16 %v44
    %v100 = vunpack.c.l.b16 %v45
    %v101 = vunpack.c.l.b16 %v46
    %v102 = vunpack.c.l.b16 %v47
    %v103 = vunpack.c.l.b16 %v48
    %v104 = vunpack.c.l.b16 %v49
    %v105 = vunpack.c.l.b16 %v50
    %v106 = vpack.c.b16 %v91, %v90
    %v107 = vpack.c.b16 %v93, %v92
    %v108 = vpack.c.b16 %v95, %v94
    %v109 = vpack.c.b16 %v97, %v96
    %v110 = vpack.c.b16 %v99, %v98
    %v111 = vpack.c.b16 %v101, %v100
    %v112 = vpack.c.b16 %v103, %v102
    %v113 = vpack.c.b16 %v105, %v104
    %v138 = vunpack.c.l.b16 %v51
    %v139 = vunpack.c.l.b16 %v52
    %v140 = vunpack.c.l.b16 %v53
    %v141 = vunpack.c.l.b16 %v54
    %v142 = vunpack.c.l.b16 %v55
    %v143 = vunpack.c.l.b16 %v56
    %v144 = vunpack.c.l.b16 %v57
    %v145 = vunpack.c.l.b16 %v58
    %v146 = vunpack.c.l.b16 %v59
    %v147 = vunpack.c.l.b16 %v60
    %v148 = vunpack.c.l.b16 %v61
    %v149 = vunpack.c.l.b16 %v62
    %v150 = vunpack.c.l.b16 %v63
    %v151 = vunpack.c.l.b16 %v64
    %v152 = vunpack.c.l.b16 %v65
    %v153 = vunpack.c.l.b16 %v66
    %v154 = vpack.c.b16 %v139, %v138
    %v155 = vpack.c.b16 %v141, %v140
    %v156 = vpack.c.b16 %v143, %v142
    %v157 = vpack.c.b16 %v145, %v144
    %v158 = vpack.c.b16 %v147, %v146
    %v159 = vpack.c.b16 %v149, %v148
    %v160 = vpack.c.b16 %v151, %v150
    %v161 = vpack.c.b16 %v153, %v152
    %170 = vmatprep.subr.bf16.mxu0 0
    %171 = vmatpush1.bf16.msra.mxu0 %v154
    %172 = vmatprep.subr.bf16.mxu0 0
    %173 = vmatpush1.bf16.msra.mxu0 %v155
    %174 = vmatprep.subr.bf16.mxu0 0
    %175 = vmatpush1.bf16.msra.mxu0 %v156
    %176 = vmatprep.subr.bf16.mxu0 0
    %177 = vmatpush1.bf16.msra.mxu0 %v157
    %178 = vmatprep.subr.bf16.mxu0 0
    %179 = vmatpush1.bf16.msra.mxu0 %v158
    %180 = vmatprep.subr.bf16.mxu0 0
    %181 = vmatpush1.bf16.msra.mxu0 %v159
    %182 = vmatprep.subr.bf16.mxu0 0
    %183 = vmatpush1.bf16.msra.mxu0 %v160
    %184 = vmatprep.subr.bf16.mxu0 0
    %185 = vmatpush1.bf16.msra.mxu0 %v161
    %186 = vmatprep.subr.bf16.mxu0 0
    %187 = vmatpush1.bf16.msra.mxu0 0
    %188 = vmatprep.subr.bf16.mxu0 0
    %189 = vmatpush1.bf16.msra.mxu0 0
    %190 = vmatprep.subr.bf16.mxu0 0
    %191 = vmatpush1.bf16.msra.mxu0 0
    %192 = vmatprep.subr.bf16.mxu0 0
    %193 = vmatpush1.bf16.msra.mxu0 0
    %194 = vmatprep.subr.bf16.mxu0 0
    %195 = vmatpush1.bf16.msra.mxu0 0
    %196 = vmatprep.subr.bf16.mxu0 0
    %197 = vmatpush1.bf16.msra.mxu0 0
    %198 = vmatprep.subr.bf16.mxu0 0
    %199 = vmatpush1.bf16.msra.mxu0 0
    %200 = vmatprep.subr.bf16.mxu0 0
    %201 = vmatpush1.bf16.msra.mxu0 0
    %202 = vmatprep.mubr.bf16.mxu0 0
    %203 = vmatmul.mubr.bf16.gmra.mrb[0].mxu0 %v106
    %v204 = vpop.f32.mrb[0].mxu0
    %v205 = vadd.f32 %v72, %v204
    %v206 = vpop.f32.mrb[0].mxu0
    %v207 = vpop.f32.mrb[0].mxu0
    %v208 = vadd.f32 %v72, %v207
    %v209 = vpop.f32.mrb[0].mxu0
    %210 = vmatprep.mubr.bf16.mxu0 0
    %211 = vmatmul.mubr.bf16.gmra.mrb[0].mxu0 %v107
    %v212 = vpop.f32.mrb[0].mxu0
    %v213 = vadd.f32 %v72, %v212
    %v214 = vpop.f32.mrb[0].mxu0
    %v215 = vpop.f32.mrb[0].mxu0
    %v216 = vadd.f32 %v72, %v215
    %v217 = vpop.f32.mrb[0].mxu0
    %218 = vmatprep.mubr.bf16.mxu0 0
    %219 = vmatmul.mubr.bf16.gmra.mrb[0].mxu0 %v108
    %v220 = vpop.f32.mrb[0].mxu0
    %v221 = vadd.f32 %v72, %v220
    %v222 = vpop.f32.mrb[0].mxu0
    %v223 = vpop.f32.mrb[0].mxu0
    %v224 = vadd.f32 %v72, %v223
    %v225 = vpop.f32.mrb[0].mxu0
    %226 = vmatprep.mubr.bf16.mxu0 0
    %227 = vmatmul.mubr.bf16.gmra.mrb[0].mxu0 %v109
    %v228 = vpop.f32.mrb[0].mxu0
    %v229 = vadd.f32 %v72, %v228
    %v230 = vpop.f32.mrb[0].mxu0
    %v231 = vpop.f32.mrb[0].mxu0
    %v232 = vadd.f32 %v72, %v231
    %v233 = vpop.f32.mrb[0].mxu0
    %234 = vmatprep.mubr.bf16.mxu0 0
    %235 = vmatmul.mubr.bf16.gmra.mrb[0].mxu0 %v110
    %v236 = vpop.f32.mrb[0].mxu0
    %v237 = vadd.f32 %v72, %v236
    %v238 = vpop.f32.mrb[0].mxu0
    %v239 = vpop.f32.mrb[0].mxu0
    %v240 = vadd.f32 %v72, %v239
    %v241 = vpop.f32.mrb[0].mxu0
    %242 = vmatprep.mubr.bf16.mxu0 0
    %243 = vmatmul.mubr.bf16.gmra.mrb[0].mxu0 %v111
    %v244 = vpop.f32.mrb[0].mxu0
    %v245 = vadd.f32 %v72, %v244
    %v246 = vpop.f32.mrb[0].mxu0
    %v247 = vpop.f32.mrb[0].mxu0
    %v248 = vadd.f32 %v72, %v247
    %v249 = vpop.f32.mrb[0].mxu0
    %250 = vmatprep.mubr.bf16.mxu0 0
    %251 = vmatmul.mubr.bf16.gmra.mrb[0].mxu0 %v112
    %v252 = vpop.f32.mrb[0].mxu0
    %v253 = vadd.f32 %v72, %v252
    %v254 = vpop.f32.mrb[0].mxu0
    %v255 = vpop.f32.mrb[0].mxu0
    %v256 = vadd.f32 %v72, %v255
    %v257 = vpop.f32.mrb[0].mxu0
    %258 = vmatprep.mubr.bf16.mxu0 0
    %259 = vmatmul.mubr.bf16.gmra.mrb[0].mxu0 %v113
    %v260 = vpop.f32.mrb[0].mxu0
    %v261 = vadd.f32 %v72, %v260
    %v262 = vpop.f32.mrb[0].mxu0
    %v263 = vpop.f32.mrb[0].mxu0
    %v264 = vadd.f32 %v72, %v263
    %v265 = vpop.f32.mrb[0].mxu0
    %266 = vdwg.mxu0
    %v267 = vmax.f32 %v205, 0.0
    %v268 = vmax.f32 %v208, 0.0
    %v269 = vmax.f32 %v213, 0.0
    %v270 = vmax.f32 %v216, 0.0
    %v271 = vmax.f32 %v221, 0.0
    %v272 = vmax.f32 %v224, 0.0
    %v273 = vmax.f32 %v229, 0.0
    %v274 = vmax.f32 %v232, 0.0
    %v275 = vmax.f32 %v237, 0.0
    %v276 = vmax.f32 %v240, 0.0
    %v277 = vmax.f32 %v245, 0.0
    %v278 = vmax.f32 %v248, 0.0
    %v279 = vmax.f32 %v253, 0.0
    %v280 = vmax.f32 %v256, 0.0
    %v281 = vmax.f32 %v261, 0.0
    %v282 = vmax.f32 %v264, 0.0
    %v283 = vpack.c.bf16 %v268, %v267
    %v284 = vpack.c.bf16 %v270, %v269
    %v285 = vpack.c.bf16 %v272, %v271
    %v286 = vpack.c.bf16 %v274, %v273
    %v287 = vpack.c.bf16 %v276, %v275
    %v288 = vpack.c.bf16 %v278, %v277
    %v289 = vpack.c.bf16 %v280, %v279
    %v290 = vpack.c.bf16 %v282, %v281
    %v291 = vld [vmem:[%s3] sm:$0xf]
    %v292 = vld [vmem:[%s3 + $0x4] sm:$0xf]
    %v293 = vld [vmem:[%s3 + $0x8] sm:$0xf]
    %v294 = vld [vmem:[%s3 + $0xc] sm:$0xf]
    %v295 = vld [vmem:[%s3 + $0x10] sm:$0xf]
    %v296 = vld [vmem:[%s3 + $0x14] sm:$0xf]
    %v297 = vld [vmem:[%s3 + $0x18] sm:$0xf]
    %v298 = vld [vmem:[%s3 + $0x1c] sm:$0xf]
    %v299 = vld [vmem:[%s3 + $0x20] sm:$0xf]
    %v300 = vld [vmem:[%s3 + $0x24] sm:$0xf]
    %v301 = vld [vmem:[%s3 + $0x28] sm:$0xf]
    %v302 = vld [vmem:[%s3 + $0x2c] sm:$0xf]
    %v303 = vld [vmem:[%s3 + $0x30] sm:$0xf]
    %v304 = vld [vmem:[%s3 + $0x34] sm:$0xf]
    %v305 = vld [vmem:[%s3 + $0x38] sm:$0xf]
    %v306 = vld [vmem:[%s3 + $0x3c] sm:$0xf]
    %v323 = vunpack.c.l.b16 %v291
    %v324 = vunpack.c.l.b16 %v292
    %v325 = vunpack.c.l.b16 %v293
    %v326 = vunpack.c.l.b16 %v294
    %v327 = vunpack.c.l.b16 %v295
    %v328 = vunpack.c.l.b16 %v296
    %v329 = vunpack.c.l.b16 %v297
    %v330 = vunpack.c.l.b16 %v298
    %v331 = vunpack.c.l.b16 %v299
    %v332 = vunpack.c.l.b16 %v300
    %v333 = vunpack.c.l.b16 %v301
    %v334 = vunpack.c.l.b16 %v302
    %v335 = vunpack.c.l.b16 %v303
    %v336 = vunpack.c.l.b16 %v304
    %v337 = vunpack.c.l.b16 %v305
    %v338 = vunpack.c.l.b16 %v306
    %v339 = vpack.c.b16 %v324, %v323
    %v340 = vpack.c.b16 %v326, %v325
    %v341 = vpack.c.b16 %v328, %v327
    %v342 = vpack.c.b16 %v330, %v329
    %v343 = vpack.c.b16 %v332, %v331
    %v344 = vpack.c.b16 %v334, %v333
    %v345 = vpack.c.b16 %v336, %v335
    %v346 = vpack.c.b16 %v338, %v337
    %355 = vmatprep.subr.bf16.mxu0 0
    %356 = vmatpush1.bf16.msra.mxu0 %v339
    %357 = vmatprep.subr.bf16.mxu0 0
    %358 = vmatpush1.bf16.msra.mxu0 %v340
    %359 = vmatprep.subr.bf16.mxu0 0
    %360 = vmatpush1.bf16.msra.mxu0 %v341
    %361 = vmatprep.subr.bf16.mxu0 0
    %362 = vmatpush1.bf16.msra.mxu0 %v342
    %363 = vmatprep.subr.bf16.mxu0 0
    %364 = vmatpush1.bf16.msra.mxu0 %v343
    %365 = vmatprep.subr.bf16.mxu0 0
    %366 = vmatpush1.bf16.msra.mxu0 %v344
    %367 = vmatprep.subr.bf16.mxu0 0
    %368 = vmatpush1.bf16.msra.mxu0 %v345
    %369 = vmatprep.subr.bf16.mxu0 0
    %370 = vmatpush1.bf16.msra.mxu0 %v346
    %371 = vmatprep.subr.bf16.mxu0 0
    %372 = vmatpush1.bf16.msra.mxu0 0
    %373 = vmatprep.subr.bf16.mxu0 0
    %374 = vmatpush1.bf16.msra.mxu0 0
    %375 = vmatprep.subr.bf16.mxu0 0
    %376 = vmatpush1.bf16.msra.mxu0 0
    %377 = vmatprep.subr.bf16.mxu0 0
    %378 = vmatpush1.bf16.msra.mxu0 0
    %379 = vmatprep.subr.bf16.mxu0 0
    %380 = vmatpush1.bf16.msra.mxu0 0
    %381 = vmatprep.subr.bf16.mxu0 0
    %382 = vmatpush1.bf16.msra.mxu0 0
    %383 = vmatprep.subr.bf16.mxu0 0
    %384 = vmatpush1.bf16.msra.mxu0 0
    %385 = vmatprep.subr.bf16.mxu0 0
    %386 = vmatpush1.bf16.msra.mxu0 0
    %387 = vmatprep.mubr.bf16.mxu0 0
    %388 = vmatmul.mubr.bf16.gmra.mrb[0].mxu0 %v283
    %v389 = vpop.f32.mrb[0].mxu0
    %v390 = vadd.f32 0.0, %v389
    %v391 = vpop.f32.mrb[0].mxu0
    %v392 = vpop.f32.mrb[0].mxu0
    %v393 = vadd.f32 0.0, %v392
    %v394 = vpop.f32.mrb[0].mxu0
    %395 = vmatprep.mubr.bf16.mxu0 0
    %396 = vmatmul.mubr.bf16.gmra.mrb[0].mxu0 %v284
    %v397 = vpop.f32.mrb[0].mxu0
    %v398 = vadd.f32 0.0, %v397
    %v399 = vpop.f32.mrb[0].mxu0
    %v400 = vpop.f32.mrb[0].mxu0
    %v401 = vadd.f32 0.0, %v400
    %v402 = vpop.f32.mrb[0].mxu0
    %403 = vmatprep.mubr.bf16.mxu0 0
    %404 = vmatmul.mubr.bf16.gmra.mrb[0].mxu0 %v285
    %v405 = vpop.f32.mrb[0].mxu0
    %v406 = vadd.f32 0.0, %v405
    %v407 = vpop.f32.mrb[0].mxu0
    %v408 = vpop.f32.mrb[0].mxu0
    %v409 = vadd.f32 0.0, %v408
    %v410 = vpop.f32.mrb[0].mxu0
    %411 = vmatprep.mubr.bf16.mxu0 0
    %412 = vmatmul.mubr.bf16.gmra.mrb[0].mxu0 %v286
    %v413 = vpop.f32.mrb[0].mxu0
    %v414 = vadd.f32 0.0, %v413
    %v415 = vpop.f32.mrb[0].mxu0
    %v416 = vpop.f32.mrb[0].mxu0
    %v417 = vadd.f32 0.0, %v416
    %v418 = vpop.f32.mrb[0].mxu0
    %419 = vmatprep.mubr.bf16.mxu0 0
    %420 = vmatmul.mubr.bf16.gmra.mrb[0].mxu0 %v287
    %v421 = vpop.f32.mrb[0].mxu0
    %v422 = vadd.f32 0.0, %v421
    %v423 = vpop.f32.mrb[0].mxu0
    %v424 = vpop.f32.mrb[0].mxu0
    %v425 = vadd.f32 0.0, %v424
    %v426 = vpop.f32.mrb[0].mxu0
    %427 = vmatprep.mubr.bf16.mxu0 0
    %428 = vmatmul.mubr.bf16.gmra.mrb[0].mxu0 %v288
    %v429 = vpop.f32.mrb[0].mxu0
    %v430 = vadd.f32 0.0, %v429
    %v431 = vpop.f32.mrb[0].mxu0
    %v432 = vpop.f32.mrb[0].mxu0
    %v433 = vadd.f32 0.0, %v432
    %v434 = vpop.f32.mrb[0].mxu0
    %435 = vmatprep.mubr.bf16.mxu0 0
    %436 = vmatmul.mubr.bf16.gmra.mrb[0].mxu0 %v289
    %v437 = vpop.f32.mrb[0].mxu0
    %v438 = vadd.f32 0.0, %v437
    %v439 = vpop.f32.mrb[0].mxu0
    %v440 = vpop.f32.mrb[0].mxu0
    %v441 = vadd.f32 0.0, %v440
    %v442 = vpop.f32.mrb[0].mxu0
    %443 = vmatprep.mubr.bf16.mxu0 0
    %444 = vmatmul.mubr.bf16.gmra.mrb[0].mxu0 %v290
    %v445 = vpop.f32.mrb[0].mxu0
    %v446 = vadd.f32 0.0, %v445
    %v447 = vpop.f32.mrb[0].mxu0
    %v448 = vpop.f32.mrb[0].mxu0
    %v449 = vadd.f32 0.0, %v448
    %v450 = vpop.f32.mrb[0].mxu0
    %451 = vdwg.mxu0
    %p452 = scmp.eq.s32.totalorder 0, 0
    // Predicated region
    $region26: #{apply.1} parent=1 // pred_check
      %p453 = pneg %p452
    $region27: #{apply.1} parent=1 // pred_check_branch
      %455 = sbr.rel (%p453) target = $region29
    $region28: #{apply.1} parent=1 // pred_region
      %v456 = vld [vmem:[%s4] sm:$0x1]
      %v458 = vlaneseq
      %v459 = vshrl.u32 %v458, 7
      %v460 = vsub.s32 0, %v459
      %v461 = vrot.slane %v456, %v460
      %v463 = vadd.f32 %v390, %v461
      %v464 = vadd.f32 %v393, %v461
      %v465 = vadd.f32 %v398, %v461
      %v466 = vadd.f32 %v401, %v461
      %v467 = vadd.f32 %v406, %v461
      %v468 = vadd.f32 %v409, %v461
      %v469 = vadd.f32 %v414, %v461
      %v470 = vadd.f32 %v417, %v461
      %v471 = vadd.f32 %v422, %v461
      %v472 = vadd.f32 %v425, %v461
      %v473 = vadd.f32 %v430, %v461
      %v474 = vadd.f32 %v433, %v461
      %v475 = vadd.f32 %v438, %v461
      %v476 = vadd.f32 %v441, %v461
      %v477 = vadd.f32 %v446, %v461
      %v478 = vadd.f32 %v449, %v461
      %479 = vst [vmem:[%s5] sm:$0xff] %v463
      %480 = vst [vmem:[%s5 + $0x8] sm:$0xff] %v464
      %481 = vst [vmem:[%s5 + $0x10] sm:$0xff] %v465
      %482 = vst [vmem:[%s5 + $0x18] sm:$0xff] %v466
      %483 = vst [vmem:[%s5 + $0x20] sm:$0xff] %v467
      %484 = vst [vmem:[%s5 + $0x28] sm:$0xff] %v468
      %485 = vst [vmem:[%s5 + $0x30] sm:$0xff] %v469
      %486 = vst [vmem:[%s5 + $0x38] sm:$0xff] %v470
      %487 = vst [vmem:[%s5 + $0x40] sm:$0xff] %v471
      %488 = vst [vmem:[%s5 + $0x48] sm:$0xff] %v472
      %489 = vst [vmem:[%s5 + $0x50] sm:$0xff] %v473
      %490 = vst [vmem:[%s5 + $0x58] sm:$0xff] %v474
      %491 = vst [vmem:[%s5 + $0x60] sm:$0xff] %v475
      %492 = vst [vmem:[%s5 + $0x68] sm:$0xff] %v476
      %493 = vst [vmem:[%s5 + $0x70] sm:$0xff] %v477
      %494 = vst [vmem:[%s5 + $0x78] sm:$0xff] %v478
    $region29: #{apply.1} parent=1 // pred_fallthru
      _
    %p495 = scmp.ne.s32.totalorder 0, 0
    // Predicated region
    $region30: #{apply.1} parent=1 // pred_check
      %p496 = pneg %p495
    $region31: #{apply.1} parent=1 // pred_check_branch
      %498 = sbr.rel (%p496) target = $region33
    $region32: #{apply.1} parent=1 // pred_region
      %v499 = vld [vmem:[%s5] sm:$0xff]
      %v500 = vld [vmem:[%s5 + $0x8] sm:$0xff]
      %v501 = vld [vmem:[%s5 + $0x10] sm:$0xff]
      %v502 = vld [vmem:[%s5 + $0x18] sm:$0xff]
      %v503 = vld [vmem:[%s5 + $0x20] sm:$0xff]
      %v504 = vld [vmem:[%s5 + $0x28] sm:$0xff]
      %v505 = vld [vmem:[%s5 + $0x30] sm:$0xff]
      %v506 = vld [vmem:[%s5 + $0x38] sm:$0xff]
      %v507 = vld [vmem:[%s5 + $0x40] sm:$0xff]
      %v508 = vld [vmem:[%s5 + $0x48] sm:$0xff]
      %v509 = vld [vmem:[%s5 + $0x50] sm:$0xff]
      %v510 = vld [vmem:[%s5 + $0x58] sm:$0xff]
      %v511 = vld [vmem:[%s5 + $0x60] sm:$0xff]
      %v512 = vld [vmem:[%s5 + $0x68] sm:$0xff]
      %v513 = vld [vmem:[%s5 + $0x70] sm:$0xff]
      %v514 = vld [vmem:[%s5 + $0x78] sm:$0xff]
      %v515 = vadd.f32 %v499, %v390
      %v516 = vadd.f32 %v500, %v393
      %v517 = vadd.f32 %v501, %v398
      %v518 = vadd.f32 %v502, %v401
      %v519 = vadd.f32 %v503, %v406
      %v520 = vadd.f32 %v504, %v409
      %v521 = vadd.f32 %v505, %v414
      %v522 = vadd.f32 %v506, %v417
      %v523 = vadd.f32 %v507, %v422
      %v524 = vadd.f32 %v508, %v425
      %v525 = vadd.f32 %v509, %v430
      %v526 = vadd.f32 %v510, %v433
      %v527 = vadd.f32 %v511, %v438
      %v528 = vadd.f32 %v512, %v441
      %v529 = vadd.f32 %v513, %v446
      %v530 = vadd.f32 %v514, %v449
      %531 = vst [vmem:[%s5] sm:$0xff] %v515
      %532 = vst [vmem:[%s5 + $0x8] sm:$0xff] %v516
      %533 = vst [vmem:[%s5 + $0x10] sm:$0xff] %v517
      %534 = vst [vmem:[%s5 + $0x18] sm:$0xff] %v518
      %535 = vst [vmem:[%s5 + $0x20] sm:$0xff] %v519
      %536 = vst [vmem:[%s5 + $0x28] sm:$0xff] %v520
      %537 = vst [vmem:[%s5 + $0x30] sm:$0xff] %v521
      %538 = vst [vmem:[%s5 + $0x38] sm:$0xff] %v522
      %539 = vst [vmem:[%s5 + $0x40] sm:$0xff] %v523
      %540 = vst [vmem:[%s5 + $0x48] sm:$0xff] %v524
      %541 = vst [vmem:[%s5 + $0x50] sm:$0xff] %v525
      %542 = vst [vmem:[%s5 + $0x58] sm:$0xff] %v526
      %543 = vst [vmem:[%s5 + $0x60] sm:$0xff] %v527
      %544 = vst [vmem:[%s5 + $0x68] sm:$0xff] %v528
      %545 = vst [vmem:[%s5 + $0x70] sm:$0xff] %v529
      %546 = vst [vmem:[%s5 + $0x78] sm:$0xff] %v530
    $region33: #{apply.1} parent=1 // pred_fallthru
      _
    // Predicated region
    $region34: #{apply.1} parent=1 // pred_check
      _
    $region35: #{apply.1} parent=1 // pred_check_branch
      %548 = sbr.rel (0) target = $region37
    $region36: #{apply.1} parent=1 // pred_region
      _
    $region37: #{apply.1} parent=1 // pred_fallthru
      _
    // Predicated region
    $region38: #{apply.1} parent=1 // pred_check
      _
    $region39: #{apply.1} parent=1 // pred_check_branch
      %550 = sbr.rel (0) target = $region41
    $region40: #{apply.1} parent=1 // pred_region
      _
    $region41: #{apply.1} parent=1 // pred_fallthru
      _
    %551 = vsyncpa [#allocation3], 1

</llo_original>
